<compile_context>
chip_gen: v7x
topology: tpu7x:2x2x1
jax: 0.10.0
libtpu: 0.0.40
codegen_flags: <defaults>
</compile_context>

<pallas_src>
import functools
import numpy as np
import jax
import jax.numpy as jnp
from jax.experimental import pallas as pl
from jax.experimental.pallas import tpu as pltpu


def _round_up(x, m):
    return ((x + m - 1) // m) * m


# ----------------------------------------------------------------------------
# Pallas kernel
#   grid = (T_pad // TM, C_pad // TC); j (class tiles) is the inner axis.
#   out[t, c] = 2 * (x_t^T P m_c) - x_t^T P x_t - m_c^T P m_c
# ----------------------------------------------------------------------------
def maha_kernel(x_ref, p_ref, mt_ref, mpm_ref, out_ref, xp_ref, xpx_ref, *, use_bf16):
    j = pl.program_id(1)

    # Compute XP = X @ P and rowsum(XP * X) once per T tile (first class tile),
    # cache in VMEM scratch for all subsequent class tiles of this T tile.
    @pl.when(j == 0)
    def _():
        x = x_ref[...]                                   # (TM, D_pad) f32
        p = p_ref[...]                                   # (D_pad, D_pad) f32
        if use_bf16:
            xp = jnp.dot(x.astype(jnp.bfloat16), p.astype(jnp.bfloat16),
                         preferred_element_type=jnp.float32)
        else:
            xp = jnp.dot(x, p, preferred_element_type=jnp.float32)
        xp_ref[...] = xp                                 # (TM, D_pad)
        xpx_ref[...] = jnp.sum(xp * x, axis=1, keepdims=True)  # (TM, 1)

    xp = xp_ref[...]                                     # (TM, D_pad)
    mt = mt_ref[...]                                     # (D_pad, TC)  == means^T tile
    if use_bf16:
        cross = jnp.dot(xp.astype(jnp.bfloat16), mt.astype(jnp.bfloat16),
                        preferred_element_type=jnp.float32)
    else:
        cross = jnp.dot(xp, mt, preferred_element_type=jnp.float32)   # (TM, TC)

    # (TM, TC) = 2*(TM, TC) - (TM, 1) - (1, TC)   (VPU broadcasts)
    out_ref[...] = 2.0 * cross - xpx_ref[...] - mpm_ref[...]


# ----------------------------------------------------------------------------
# Init-time preparation: pad / transpose the static per-detector tensors once.
# ----------------------------------------------------------------------------
def prepare_detector(class_means, precision, mPm):
    C, D = class_means.shape
    D_pad = _round_up(D, 128)
    C_pad = _round_up(C, 128)

    p_pad = jnp.zeros((D_pad, D_pad), jnp.float32).at[:D, :D].set(precision)
    mt_pad = jnp.zeros((D_pad, C_pad), jnp.float32).at[:D, :C].set(class_means.T)
    mpm_pad = jnp.zeros((1, C_pad), jnp.float32).at[0, :C].set(mPm)
    return {"p": p_pad, "mt": mt_pad, "mpm": mpm_pad,
            "C": C, "D": D, "C_pad": C_pad, "D_pad": D_pad}


# ----------------------------------------------------------------------------
# Forward wrapper
# ----------------------------------------------------------------------------
def maha_forward(target_features, class_means, prepared, *,
                 t_tile=256, c_tile=512, use_bf16=False):
    T, D = target_features.shape
    C = prepared["C"]
    D_pad = prepared["D_pad"]
    C_pad = prepared["C_pad"]

    TM = min(t_tile, _round_up(T, 8))          # sublane-aligned T tile
    T_pad = _round_up(T, TM)
    TC = min(_round_up(c_tile, 128), C_pad)    # lane-aligned C tile

    x_pad = jnp.zeros((T_pad, D_pad), jnp.float32).at[:T, :D].set(
        target_features.astype(jnp.float32))

    grid = (T_pad // TM, C_pad // TC)

    flops = 2 * T_pad * D_pad * D_pad + 2 * T_pad * C_pad * D_pad + 5 * T_pad * C_pad
    bytes_accessed = 4 * (T_pad * D_pad + D_pad * D_pad + D_pad * C_pad
                          + C_pad + T_pad * C_pad)

    # TODO(synk): for very large D (e.g. >= 2048 on v7x's 64 MiB VMEM) add a K
    # grid axis tiling the contraction over D instead of keeping the full
    # (D_pad, D_pad) precision block resident.
    logits_pad = pl.pallas_call(
        functools.partial(maha_kernel, use_bf16=use_bf16),
        out_shape=jax.ShapeDtypeStruct((T_pad, C_pad), jnp.float32),
        grid=grid,
        in_specs=[
            pl.BlockSpec((TM, D_pad), lambda i, j: (i, 0)),      # X tile
            pl.BlockSpec((D_pad, D_pad), lambda i, j: (0, 0)),   # shared precision
            pl.BlockSpec((D_pad, TC), lambda i, j: (0, j)),      # means^T tile
            pl.BlockSpec((1, TC), lambda i, j: (0, j)),          # m^T P m tile
        ],
        out_specs=pl.BlockSpec((TM, TC), lambda i, j: (i, j)),   # lane-dense (T, C)
        scratch_shapes=[
            pltpu.VMEM((TM, D_pad), jnp.float32),                # XP cache
            pltpu.VMEM((TM, 1), jnp.float32),                    # rowsum(XP*X) cache
        ],
        compiler_params=pltpu.CompilerParams(
            dimension_semantics=("parallel", "arbitrary")),
        cost_estimate=pl.CostEstimate(
            flops=flops, transcendentals=0, bytes_accessed=bytes_accessed),
    )(x_pad, prepared["p"], prepared["mt"], prepared["mpm"])

    sample_logits = logits_pad[:T, :C]         # drop padding
    return sample_logits, class_means


# ----------------------------------------------------------------------------
# "__init__" glue: class means + tied precision + m^T P m (plain numpy).
# Reproduces MAHDetector._build_class_reps_and_covariance_estimates
# with tied_covariance=True.
# ----------------------------------------------------------------------------
def estimate_unscaled_cov(examples):
    ex = examples.T                                   # rowvar=False -> (D, Nc)
    ex = ex - ex.mean(axis=1, keepdims=True)
    return ex @ ex.T                                  # centered scatter matrix


def build_stats(context_features, context_labels):
    classes = np.unique(context_labels)
    means, scatters = [], []
    for c in classes:
        feats = context_features[context_labels == c]
        means.append(feats.mean(axis=0))              # mean_pooling
        scatters.append(estimate_unscaled_cov(feats))
    class_means = np.stack(means)                     # (C, D)
    shared_cov = np.stack(scatters).sum(0) / len(context_labels)
    precision = np.linalg.inv(shared_cov)             # tied: same for every class
    precision = 0.5 * (precision + precision.T)       # symmetrize: expansion is exact
    mPm = np.einsum("cd,de,ce->c", class_means, precision, class_means)
    return (class_means.astype(np.float32),
            precision.astype(np.float32),
            mPm.astype(np.float32))


# ----------------------------------------------------------------------------
# Pure-JAX reference mirroring the torch forward exactly (repeat/view/permute)
# ----------------------------------------------------------------------------
def torch_style_reference(target, means, prec_single):
    T, D = target.shape
    C = means.shape[0]
    prec = jnp.broadcast_to(prec_single, (C, D, D))
    repeated_target = jnp.tile(target, (1, C)).reshape(-1, D)
    repeated_class_means = jnp.tile(means, (T, 1))
    diff = (repeated_class_means - repeated_target).reshape(T, C, D).transpose(1, 0, 2)
    first_half = jnp.matmul(diff, prec)
    return (first_half * diff).sum(axis=2).T * -1.0


if __name__ == "__main__":
    # Small, deterministic synthetic setup.
    C = 4           # number of classes
    PER_CLASS = 12  # context samples per class (keeps tied scatter invertible)
    D = 32          # feature dim
    T = 8           # number of target / query samples

    key = jax.random.PRNGKey(0)
    k_ctx, k_tgt = jax.random.split(key)

    context_features = np.asarray(
        jax.random.normal(k_ctx, (C * PER_CLASS, D), dtype=jnp.float32))
    context_labels = np.repeat(np.arange(C), PER_CLASS).astype(np.int32)
    target_features = jax.random.normal(k_tgt, (T, D), dtype=jnp.float32)

    class_means_np, precision_np, mPm_np = build_stats(context_features, context_labels)
    class_means = jnp.asarray(class_means_np)
    precision = jnp.asarray(precision_np)
    mPm = jnp.asarray(mPm_np)

    prepared = prepare_detector(class_means, precision, mPm)

    sample_logits, out_means = maha_forward(target_features, class_means, prepared)
    sample_logits = jax.block_until_ready(sample_logits)

    # Correctness check against the torch-semantics reference.
    ref_logits = torch_style_reference(target_features, class_means, precision)
    np.testing.assert_allclose(
        np.asarray(sample_logits), np.asarray(ref_logits), rtol=1e-4, atol=1e-3)
    assert sample_logits.shape == (T, C)
    assert out_means.shape == (C, D)

    print("KERNEL_OK")
</pallas_src>

<mosaic_0001>
module attributes {stable_mosaic.version = 11 : i64} {
  func.func @maha_kernel(%arg0: i32, %arg1: i32, %arg2: memref<8x128xf32, #tpu.memory_space<vmem>>, %arg3: memref<128x128xf32, #tpu.memory_space<vmem>>, %arg4: memref<128x128xf32, #tpu.memory_space<vmem>>, %arg5: memref<1x128xf32, #tpu.memory_space<vmem>>, %arg6: memref<8x128xf32, #tpu.memory_space<vmem>>, %arg7: memref<8x128xf32, #tpu.memory_space<vmem>>, %arg8: memref<8x1xf32, #tpu.memory_space<vmem>>) attributes {dimension_semantics = [#tpu.dimension_semantics<parallel>, #tpu.dimension_semantics<arbitrary>], iteration_bounds = array<i64: 1, 1>, scalar_prefetch = 0 : i64, scratch_operands = 2 : i64, tpu.core_type = #tpu.core_type<tc>, window_params = [{transform_indices = @transform_0, window_bounds = array<i64: 8, 128>}, {pipeline_mode = #tpu.pipeline_mode<synchronous>, transform_indices = @transform_1, window_bounds = array<i64: 128, 128>}, {transform_indices = @transform_2, window_bounds = array<i64: 128, 128>}, {transform_indices = @transform_3, window_bounds = array<i64: 1, 128>}, {transform_indices = @transform_4, window_bounds = array<i64: 8, 128>}]} {
    %c0_i32 = arith.constant 0 : i32
    %0 = arith.cmpi eq, %arg1, %c0_i32 : i32
    %1 = arith.extui %0 : i1 to i32
    %c0_i32_0 = arith.constant 0 : i32
    %2 = arith.cmpi ne, %1, %c0_i32_0 : i32
    scf.if %2 {
      %c0_11 = arith.constant 0 : index
      %c0_12 = arith.constant 0 : index
      %15 = vector.load %arg2[%c0_11, %c0_12] : memref<8x128xf32, #tpu.memory_space<vmem>>, vector<8x128xf32>
      %c0_13 = arith.constant 0 : index
      %c0_14 = arith.constant 0 : index
      %16 = vector.load %arg3[%c0_13, %c0_14] : memref<128x128xf32, #tpu.memory_space<vmem>>, vector<128x128xf32>
      %cst_15 = arith.constant dense<0.000000e+00> : vector<8x128xf32>
      %17 = tpu.matmul %15, %16, %cst_15 {dimension_numbers = #tpu.dot_dimension_numbers<[1], [0], [0], [1], [0, 0, 1, 1], [], []>} : vector<8x128xf32>, vector<128x128xf32>, vector<8x128xf32> -> vector<8x128xf32>
      %c0_16 = arith.constant 0 : index
      %c0_17 = arith.constant 0 : index
      %18 = vector.load %arg7[%c0_16, %c0_17] : memref<8x128xf32, #tpu.memory_space<vmem>>, vector<8x128xf32>
      tpu.vector_store %arg7[%c0_16, %c0_17], %17 {strides = array<i32>} : memref<8x128xf32, #tpu.memory_space<vmem>>, vector<8x128xf32>,
      %19 = arith.mulf %17, %15 : vector<8x128xf32>
      %cst_18 = arith.constant dense<0.000000e+00> : vector<8xf32>
      %20 = vector.multi_reduction <add>, %19, %cst_18 [1] : vector<8x128xf32> to vector<8xf32>
      %21 = vector.shape_cast %20 : vector<8xf32> to vector<8x1xf32>
      %c0_19 = arith.constant 0 : index
      %c0_20 = arith.constant 0 : index
      %22 = vector.load %arg8[%c0_19, %c0_20] : memref<8x1xf32, #tpu.memory_space<vmem>>, vector<8x1xf32>
      tpu.vector_store %arg8[%c0_19, %c0_20], %21 {strides = array<i32>} : memref<8x1xf32, #tpu.memory_space<vmem>>, vector<8x1xf32>,
    } else {
    }
    %c0 = arith.constant 0 : index
    %c0_1 = arith.constant 0 : index
    %3 = vector.load %arg7[%c0, %c0_1] : memref<8x128xf32, #tpu.memory_space<vmem>>, vector<8x128xf32>
    %c0_2 = arith.constant 0 : index
    %c0_3 = arith.constant 0 : index
    %4 = vector.load %arg4[%c0_2, %c0_3] : memref<128x128xf32, #tpu.memory_space<vmem>>, vector<128x128xf32>
    %cst = arith.constant dense<0.000000e+00> : vector<8x128xf32>
    %5 = tpu.matmul %3, %4, %cst {dimension_numbers = #tpu.dot_dimension_numbers<[1], [0], [0], [1], [0, 0, 1, 1], [], []>} : vector<8x128xf32>, vector<128x128xf32>, vector<8x128xf32> -> vector<8x128xf32>
    %cst_4 = arith.constant 2.000000e+00 : f32
    %6 = vector.broadcast %cst_4 : f32 to vector<8x128xf32>
    %7 = arith.mulf %6, %5 : vector<8x128xf32>
    %c0_5 = arith.constant 0 : index
    %c0_6 = arith.constant 0 : index
    %8 = vector.load %arg8[%c0_5, %c0_6] : memref<8x1xf32, #tpu.memory_space<vmem>>, vector<8x1xf32>
    %9 = vector.broadcast %8 : vector<8x1xf32> to vector<8x128xf32>
    %10 = arith.subf %7, %9 : vector<8x128xf32>
    %c0_7 = arith.constant 0 : index
    %c0_8 = arith.constant 0 : index
    %11 = vector.load %arg5[%c0_7, %c0_8] : memref<1x128xf32, #tpu.memory_space<vmem>>, vector<1x128xf32>
    %12 = vector.broadcast %11 : vector<1x128xf32> to vector<8x128xf32>
    %13 = arith.subf %10, %12 : vector<8x128xf32>
    %c0_9 = arith.constant 0 : index
    %c0_10 = arith.constant 0 : index
    %14 = vector.load %arg6[%c0_9, %c0_10] : memref<8x128xf32, #tpu.memory_space<vmem>>, vector<8x128xf32>
    tpu.vector_store %arg6[%c0_9, %c0_10], %13 {strides = array<i32>} : memref<8x128xf32, #tpu.memory_space<vmem>>, vector<8x128xf32>,
    return
  }
  func.func @transform_0(%arg0: i32, %arg1: i32) -> (i32, i32) {
    %c0_i32 = arith.constant 0 : i32
    %c0_i32_0 = arith.constant 0 : i32
    return %arg0, %c0_i32 : i32, i32
  }
  func.func @transform_1(%arg0: i32, %arg1: i32) -> (i32, i32) {
    %c0_i32 = arith.constant 0 : i32
    %c0_i32_0 = arith.constant 0 : i32
    %c0_i32_1 = arith.constant 0 : i32
    return %c0_i32, %c0_i32_0 : i32, i32
  }
  func.func @transform_2(%arg0: i32, %arg1: i32) -> (i32, i32) {
    %c0_i32 = arith.constant 0 : i32
    %c0_i32_0 = arith.constant 0 : i32
    return %c0_i32, %arg1 : i32, i32
  }
  func.func @transform_3(%arg0: i32, %arg1: i32) -> (i32, i32) {
    %c0_i32 = arith.constant 0 : i32
    %c0_i32_0 = arith.constant 0 : i32
    return %c0_i32, %arg1 : i32, i32
  }
  func.func @transform_4(%arg0: i32, %arg1: i32) -> (i32, i32) {
    %c0_i32 = arith.constant 0 : i32
    return %arg0, %arg1 : i32, i32
  }
}

</mosaic_0001>

<llo_original>
// kernel: tpu_custom_call.1
$region0: #{tpu_custom_call.1}
  #allocation0 [shape = 'u32[]', space=smem, size = 0x4, offset = 0x4, fixed_abs, tag = 'smem constant byte address 0x4 - core index']
  #allocation1 [shape = 'u32[144,128]{1,0:T(1,128)}', space=vmem, size = 0x12000, scoped, tag = 'internal scratch']
  #allocation2 [shape = 'f32[8,128]{1,0:T(8,128)}', space=vmem, size = 0x1000, scoped, tag = 'scratch operand']
  #allocation3 [shape = 'f32[8,1]{1,0:T(8,128)}', space=vmem, size = 0x1000, scoped, tag = 'scratch operand']
  %s0 = inlined_call_operand.hbm [shape: f32[8,128], index: 0, kind: input, shape index: {}]
  %s1 = inlined_call_operand.hbm [shape: f32[128,128], index: 1, kind: input, shape index: {}]
  %s2 = inlined_call_operand.hbm [shape: f32[128,128], index: 2, kind: input, shape index: {}]
  %s3 = inlined_call_operand.vmem [shape: f32[1,128], index: 3, kind: input, shape index: {}]
  %s4 = inlined_call_operand.hbm [shape: f32[8,128], index: 4, kind: output, shape index: {}]
  %s5 = sld [smem:[#allocation0]]
  $region42: #{tpu_custom_call.1} parent=0
    _
  %s7 = ssub.s32 1, %s5
  %s8 = scalar_select 0, %s7, %s5
  $region1: #{tpu_custom_call.1} parent=0
    #allocation4 [shape = 'u8[4096]{0}', space=vmem, size = 0x1000, scoped, tag = 'input window, operand 0, single buffered']
    #allocation5 [shape = 's32[1]{0}', space=sflag, size = 0x4, scoped, tag = 'scoped memory for tpu_custom_call.1']
    #allocation6 [shape = 's32[1]{0}', space=sflag, size = 0x4, scoped, tag = 'scoped memory for tpu_custom_call.1']
    #allocation7 [shape = 'u8[65536]{0}', space=vmem, size = 0x10000, scoped, tag = 'input window, operand 1, single buffered']
    #allocation8 [shape = 's32[1]{0}', space=sflag, size = 0x4, scoped, tag = 'scoped memory for tpu_custom_call.1']
    #allocation9 [shape = 'u8[65536]{0}', space=vmem, size = 0x10000, scoped, tag = 'input window, operand 2, single buffered']
    #allocation10 [shape = 'u8[4096]{0}', space=vmem, size = 0x1000, scoped, tag = 'output window, operand 0, single buffered']
    %9 = vsyncpa [#allocation5], 0
    %10 = vsyncpa [#allocation8], 0
    %11 = vsyncpa [#allocation6], 0
    // Predicated region
    $region2: #{tpu_custom_call.1} parent=1 // pred_check
      _
    $region3: #{tpu_custom_call.1} parent=1 // pred_check_branch
      %13 = sbr.rel (0) target = $region5
    $region4: #{tpu_custom_call.1} parent=1 // pred_region
      %s15 = ssub.s32 128, 128
      %16 = vsyncadd [#allocation5], %s15
      %s18 = sshll.u32 [#allocation4], 4
      %s19 = int_to_ptr.vmem [resolvable:$true] %s18
      %21 = dma.hbm_to_vmem [thread:$0]  %s0, 128, %s19, [#allocation5]
    $region5: #{tpu_custom_call.1} parent=1 // pred_fallthru
      _
    // Predicated region
    $region6: #{tpu_custom_call.1} parent=1 // pred_check
      _
    $region7: #{tpu_custom_call.1} parent=1 // pred_check_branch
      %23 = sbr.rel (0) target = $region9
    $region8: #{tpu_custom_call.1} parent=1 // pred_region
      %s25 = ssub.s32 2048, 2048
      %26 = vsyncadd [#allocation8], %s25
      %s27 = sshll.u32 [#allocation7], 4
      %s28 = int_to_ptr.vmem [resolvable:$true] %s27
      %33 = dma.hbm_to_vmem [thread:$0]  %s1, 2048, %s28, [#allocation8], 128, 128, 8
    $region9: #{tpu_custom_call.1} parent=1 // pred_fallthru
      _
    // Predicated region
    $region10: #{tpu_custom_call.1} parent=1 // pred_check
      _
    $region11: #{tpu_custom_call.1} parent=1 // pred_check_branch
      %35 = sbr.rel (0) target = $region13
    $region12: #{tpu_custom_call.1} parent=1 // pred_region
      %s37 = ssub.s32 2048, 2048
      %38 = vsyncadd [#allocation8], %s37
      %s39 = sshll.u32 [#allocation9], 4
      %s40 = int_to_ptr.vmem [resolvable:$true] %s39
      %45 = dma.hbm_to_vmem [thread:$0]  %s2, 2048, %s40, [#allocation8], 128, 128, 8
    $region13: #{tpu_custom_call.1} parent=1 // pred_fallthru
      _
    // Predicated region
    $region14: #{tpu_custom_call.1} parent=1 // pred_check
      _
    $region15: #{tpu_custom_call.1} parent=1 // pred_check_branch
      %47 = sbr.rel (0) target = $region17
    $region16: #{tpu_custom_call.1} parent=1 // pred_region
      _
    $region17: #{tpu_custom_call.1} parent=1 // pred_fallthru
      _
    // Predicated region
    $region18: #{tpu_custom_call.1} parent=1 // pred_check
      _
    $region19: #{tpu_custom_call.1} parent=1 // pred_check_branch
      %49 = sbr.rel (0) target = $region21
    $region20: #{tpu_custom_call.1} parent=1 // pred_region
      %50 = dma.done [#allocation5], 128
    $region21: #{tpu_custom_call.1} parent=1 // pred_fallthru
      _
    // Predicated region
    $region22: #{tpu_custom_call.1} parent=1 // pred_check
      _
    $region23: #{tpu_custom_call.1} parent=1 // pred_check_branch
      %52 = sbr.rel (0) target = $region25
    $region24: #{tpu_custom_call.1} parent=1 // pred_region
      %53 = dma.done [#allocation8], 2048
    $region25: #{tpu_custom_call.1} parent=1 // pred_fallthru
      _
    // Predicated region
    $region26: #{tpu_custom_call.1} parent=1 // pred_check
      _
    $region27: #{tpu_custom_call.1} parent=1 // pred_check_branch
      %55 = sbr.rel (0) target = $region29
    $region28: #{tpu_custom_call.1} parent=1 // pred_region
      %56 = dma.done [#allocation8], 2048
    $region29: #{tpu_custom_call.1} parent=1 // pred_fallthru
      _
    %p57 = scmp.eq.s32.totalorder 0, 0
    // Predicated region
    $region30: #{tpu_custom_call.1} parent=1 // pred_check
      %p58 = pneg %p57
    $region31: #{tpu_custom_call.1} parent=1 // pred_check_branch
      %60 = sbr.rel (%p58) target = $region33
    $region32: #{tpu_custom_call.1} parent=1 // pred_region
      %v61 = vld [vmem:[#allocation4] sm:$0xff]
      %v62 = vld [vmem:[#allocation7] sm:$0xff]
      %v63 = vld [vmem:[#allocation7 + $0x8] sm:$0xff]
      %v64 = vld [vmem:[#allocation7 + $0x10] sm:$0xff]
      %v65 = vld [vmem:[#allocation7 + $0x18] sm:$0xff]
      %v66 = vld [vmem:[#allocation7 + $0x20] sm:$0xff]
      %v67 = vld [vmem:[#allocation7 + $0x28] sm:$0xff]
      %v68 = vld [vmem:[#allocation7 + $0x30] sm:$0xff]
      %v69 = vld [vmem:[#allocation7 + $0x38] sm:$0xff]
      %v70 = vld [vmem:[#allocation7 + $0x40] sm:$0xff]
      %v71 = vld [vmem:[#allocation7 + $0x48] sm:$0xff]
      %v72 = vld [vmem:[#allocation7 + $0x50] sm:$0xff]
      %v73 = vld [vmem:[#allocation7 + $0x58] sm:$0xff]
      %v74 = vld [vmem:[#allocation7 + $0x60] sm:$0xff]
      %v75 = vld [vmem:[#allocation7 + $0x68] sm:$0xff]
      %v76 = vld [vmem:[#allocation7 + $0x70] sm:$0xff]
      %v77 = vld [vmem:[#allocation7 + $0x78] sm:$0xff]
      %78 = vmatprep.subr.mxu0 0.0
      %79 = vmatpush1.msra.mxu0 %v62
      %80 = vmatprep.subr.mxu0 0.0
      %81 = vmatpush1.msra.mxu0 %v63
      %82 = vmatprep.subr.mxu0 0.0
      %83 = vmatpush1.msra.mxu0 %v64
      %84 = vmatprep.subr.mxu0 0.0
      %85 = vmatpush1.msra.mxu0 %v65
      %86 = vmatprep.subr.mxu0 0.0
      %87 = vmatpush1.msra.mxu0 %v66
      %88 = vmatprep.subr.mxu0 0.0
      %89 = vmatpush1.msra.mxu0 %v67
      %90 = vmatprep.subr.mxu0 0.0
      %91 = vmatpush1.msra.mxu0 %v68
      %92 = vmatprep.subr.mxu0 0.0
      %93 = vmatpush1.msra.mxu0 %v69
      %94 = vmatprep.subr.mxu0 0.0
      %95 = vmatpush1.msra.mxu0 %v70
      %96 = vmatprep.subr.mxu0 0.0
      %97 = vmatpush1.msra.mxu0 %v71
      %98 = vmatprep.subr.mxu0 0.0
      %99 = vmatpush1.msra.mxu0 %v72
      %100 = vmatprep.subr.mxu0 0.0
      %101 = vmatpush1.msra.mxu0 %v73
      %102 = vmatprep.subr.mxu0 0.0
      %103 = vmatpush1.msra.mxu0 %v74
      %104 = vmatprep.subr.mxu0 0.0
      %105 = vmatpush1.msra.mxu0 %v75
      %106 = vmatprep.subr.mxu0 0.0
      %107 = vmatpush1.msra.mxu0 %v76
      %108 = vmatprep.subr.mxu0 0.0
      %109 = vmatpush1.msra.mxu0 %v77
      %110 = vmatprep.subr.mxu0 0.0
      %111 = vmatpush1.msra.mxu0 0.0
      %112 = vmatprep.subr.mxu0 0.0
      %113 = vmatpush1.msra.mxu0 0.0
      %114 = vmatprep.subr.mxu0 0.0
      %115 = vmatpush1.msra.mxu0 0.0
      %116 = vmatprep.subr.mxu0 0.0
      %117 = vmatpush1.msra.mxu0 0.0
      %118 = vmatprep.subr.mxu0 0.0
      %119 = vmatpush1.msra.mxu0 0.0
      %120 = vmatprep.subr.mxu0 0.0
      %121 = vmatpush1.msra.mxu0 0.0
      %122 = vmatprep.subr.mxu0 0.0
      %123 = vmatpush1.msra.mxu0 0.0
      %124 = vmatprep.subr.mxu0 0.0
      %125 = vmatpush1.msra.mxu0 0.0
      %126 = vmatprep.subr.mxu0 0.0
      %127 = vmatpush1.msra.mxu0 0.0
      %128 = vmatprep.subr.mxu0 0.0
      %129 = vmatpush1.msra.mxu0 0.0
      %130 = vmatprep.subr.mxu0 0.0
      %131 = vmatpush1.msra.mxu0 0.0
      %132 = vmatprep.subr.mxu0 0.0
      %133 = vmatpush1.msra.mxu0 0.0
      %134 = vmatprep.subr.mxu0 0.0
      %135 = vmatpush1.msra.mxu0 0.0
      %136 = vmatprep.subr.mxu0 0.0
      %137 = vmatpush1.msra.mxu0 0.0
      %138 = vmatprep.subr.mxu0 0.0
      %139 = vmatpush1.msra.mxu0 0.0
      %140 = vmatprep.subr.mxu0 0.0
      %141 = vmatpush1.msra.mxu0 0.0
      %142 = vmatprep.mubr.f32.mxu0 0.0
      %143 = vmatmul.mubr.f32.gmra.mrb[0].mxu0 %v61
      %v144 = vpop.f32.mrb[0].mxu0
      %v145 = vadd.f32 0.0, %v144
      %v146 = vpop.f32.mrb[0].mxu0
      %147 = vdwg.mxu0
      %148 = vst [vmem:[#allocation2] sm:$0xff] %v145
      %v149 = vmul.f32 %v145, %v61
      %150 = vadd.xlane.f32.xlu0 %v149
      %v151 = vpop.xlane.xlu0 %150
      %vm152 = vcmask 7168
      %153 = vst.msk [vmem:[#allocation3] sm:$0xff] %vm152, %v151
    $region33: #{tpu_custom_call.1} parent=1 // pred_fallthru
      _
    %v154 = vld [vmem:[#allocation2] sm:$0xff]
    %v155 = vld [vmem:[#allocation9] sm:$0xff]
    %v156 = vld [vmem:[#allocation9 + $0x8] sm:$0xff]
    %v157 = vld [vmem:[#allocation9 + $0x10] sm:$0xff]
    %v158 = vld [vmem:[#allocation9 + $0x18] sm:$0xff]
    %v159 = vld [vmem:[#allocation9 + $0x20] sm:$0xff]
    %v160 = vld [vmem:[#allocation9 + $0x28] sm:$0xff]
    %v161 = vld [vmem:[#allocation9 + $0x30] sm:$0xff]
    %v162 = vld [vmem:[#allocation9 + $0x38] sm:$0xff]
    %v163 = vld [vmem:[#allocation9 + $0x40] sm:$0xff]
    %v164 = vld [vmem:[#allocation9 + $0x48] sm:$0xff]
    %v165 = vld [vmem:[#allocation9 + $0x50] sm:$0xff]
    %v166 = vld [vmem:[#allocation9 + $0x58] sm:$0xff]
    %v167 = vld [vmem:[#allocation9 + $0x60] sm:$0xff]
    %v168 = vld [vmem:[#allocation9 + $0x68] sm:$0xff]
    %v169 = vld [vmem:[#allocation9 + $0x70] sm:$0xff]
    %v170 = vld [vmem:[#allocation9 + $0x78] sm:$0xff]
    %171 = vmatprep.subr.mxu0 0.0
    %172 = vmatpush1.msra.mxu0 %v155
    %173 = vmatprep.subr.mxu0 0.0
    %174 = vmatpush1.msra.mxu0 %v156
    %175 = vmatprep.subr.mxu0 0.0
    %176 = vmatpush1.msra.mxu0 %v157
    %177 = vmatprep.subr.mxu0 0.0
    %178 = vmatpush1.msra.mxu0 %v158
    %179 = vmatprep.subr.mxu0 0.0
    %180 = vmatpush1.msra.mxu0 %v159
    %181 = vmatprep.subr.mxu0 0.0
    %182 = vmatpush1.msra.mxu0 %v160
    %183 = vmatprep.subr.mxu0 0.0
    %184 = vmatpush1.msra.mxu0 %v161
    %185 = vmatprep.subr.mxu0 0.0
    %186 = vmatpush1.msra.mxu0 %v162
    %187 = vmatprep.subr.mxu0 0.0
    %188 = vmatpush1.msra.mxu0 %v163
    %189 = vmatprep.subr.mxu0 0.0
    %190 = vmatpush1.msra.mxu0 %v164
    %191 = vmatprep.subr.mxu0 0.0
    %192 = vmatpush1.msra.mxu0 %v165
    %193 = vmatprep.subr.mxu0 0.0
    %194 = vmatpush1.msra.mxu0 %v166
    %195 = vmatprep.subr.mxu0 0.0
    %196 = vmatpush1.msra.mxu0 %v167
    %197 = vmatprep.subr.mxu0 0.0
    %198 = vmatpush1.msra.mxu0 %v168
    %199 = vmatprep.subr.mxu0 0.0
    %200 = vmatpush1.msra.mxu0 %v169
    %201 = vmatprep.subr.mxu0 0.0
    %202 = vmatpush1.msra.mxu0 %v170
    %203 = vmatprep.subr.mxu0 0.0
    %204 = vmatpush1.msra.mxu0 0.0
    %205 = vmatprep.subr.mxu0 0.0
    %206 = vmatpush1.msra.mxu0 0.0
    %207 = vmatprep.subr.mxu0 0.0
    %208 = vmatpush1.msra.mxu0 0.0
    %209 = vmatprep.subr.mxu0 0.0
    %210 = vmatpush1.msra.mxu0 0.0
    %211 = vmatprep.subr.mxu0 0.0
    %212 = vmatpush1.msra.mxu0 0.0
    %213 = vmatprep.subr.mxu0 0.0
    %214 = vmatpush1.msra.mxu0 0.0
    %215 = vmatprep.subr.mxu0 0.0
    %216 = vmatpush1.msra.mxu0 0.0
    %217 = vmatprep.subr.mxu0 0.0
    %218 = vmatpush1.msra.mxu0 0.0
    %219 = vmatprep.subr.mxu0 0.0
    %220 = vmatpush1.msra.mxu0 0.0
    %221 = vmatprep.subr.mxu0 0.0
    %222 = vmatpush1.msra.mxu0 0.0
    %223 = vmatprep.subr.mxu0 0.0
    %224 = vmatpush1.msra.mxu0 0.0
    %225 = vmatprep.subr.mxu0 0.0
    %226 = vmatpush1.msra.mxu0 0.0
    %227 = vmatprep.subr.mxu0 0.0
    %228 = vmatpush1.msra.mxu0 0.0
    %229 = vmatprep.subr.mxu0 0.0
    %230 = vmatpush1.msra.mxu0 0.0
    %231 = vmatprep.subr.mxu0 0.0
    %232 = vmatpush1.msra.mxu0 0.0
    %233 = vmatprep.subr.mxu0 0.0
    %234 = vmatpush1.msra.mxu0 0.0
    %235 = vmatprep.mubr.f32.mxu0 0.0
    %236 = vmatmul.mubr.f32.gmra.mrb[0].mxu0 %v154
    %v237 = vpop.f32.mrb[0].mxu0
    %v238 = vadd.f32 0.0, %v237
    %v239 = vpop.f32.mrb[0].mxu0
    %240 = vdwg.mxu0
    %v241 = vmul.f32 %v238, 2.0
    %v242 = vld [vmem:[#allocation3] sm:$0xff]
    %244 = vset.pattern.permute.xlu0 0
    %245 = vperm.xlu0 %244, %v242
    %v246 = vpop.permute.xlu0 %245
    %v248 = vsub.f32 %v241, %v246
    %v249 = vld [vmem:[%s3] sm:$0x1]
    %v251 = vlaneseq
    %v252 = vshrl.u32 %v251, 7
    %v253 = vsub.s32 0, %v252
    %v254 = vrot.slane %v249, %v253
    %v256 = vsub.f32 %v248, %v254
    %257 = vst [vmem:[#allocation10] sm:$0xff] %v256
    // Predicated region
    $region34: #{tpu_custom_call.1} parent=1 // pred_check
      _
    $region35: #{tpu_custom_call.1} parent=1 // pred_check_branch
      %259 = sbr.rel (0) target = $region37
    $region36: #{tpu_custom_call.1} parent=1 // pred_region
      %s261 = ssub.s32 128, 128
      %262 = vsyncadd [#allocation6], %s261
      %s264 = sshll.u32 [#allocation10], 4
      %s265 = int_to_ptr.vmem [resolvable:$true] %s264
      %267 = dma.vmem_to_hbm [thread:$0]  %s265, 128, %s4, [#allocation6]
    $region37: #{tpu_custom_call.1} parent=1 // pred_fallthru
      _
    // Predicated region
    $region38: #{tpu_custom_call.1} parent=1 // pred_check
      _
    $region39: #{tpu_custom_call.1} parent=1 // pred_check_branch
      %269 = sbr.rel (0) target = $region41
    $region40: #{tpu_custom_call.1} parent=1 // pred_region
      %270 = dma.done [#allocation6], 128
    $region41: #{tpu_custom_call.1} parent=1 // pred_fallthru
      _
    %271 = vsyncpa [#allocation5], 1
    %272 = vsyncpa [#allocation8], 1
    %273 = vsyncpa [#allocation6], 1

</llo_original>
